<compile_context>
chip_gen: v5e
topology: v5e:2x2
jax: 0.10.0
libtpu: 0.0.40
codegen_flags: <defaults>
</compile_context>

<pallas_src>
import functools

import jax
import jax.numpy as jnp
from jax import lax
from jax.experimental import pallas as pl
from jax.experimental.pallas import tpu as pltpu


def _as_i32(v: int) -> int:
    """Python int -> equivalent signed-int32 Python int (two's complement bit pattern)."""
    v &= 0xFFFFFFFF
    return v - (1 << 32) if v >= (1 << 31) else v


_MIX_C1 = _as_i32(0x7FEB352D)
_MIX_C2 = _as_i32(0x846CA68B)
_GOLDEN = _as_i32(0x9E3779B9)


def _mix32(x):
    """lowbias32 mixer on int32 bit patterns.

    Wrapping int32 multiplies produce the same bits as uint32; logical right shifts are
    emulated with an arithmetic shift + mask, so only plain int32 ops are used (supported
    by Mosaic on all TPU generations and by interpret mode).
    """
    x = x ^ ((x >> 16) & 0xFFFF)
    x = x * _MIX_C1
    x = x ^ ((x >> 15) & 0x1FFFF)
    x = x * _MIX_C2
    x = x ^ ((x >> 16) & 0xFFFF)
    return x


def _make_positional_encoding(d_model: int, word_pad_len: int) -> jnp.ndarray:
    """Replicates the PyTorch __init__ pe table construction (float32)."""
    pos = jnp.arange(word_pad_len, dtype=jnp.float32)[:, None]      # (L, 1)
    i = jnp.arange(d_model, dtype=jnp.float32)[None, :]             # (1, D)
    denom = jnp.power(10000.0, jnp.floor(i / 2.0) * 2.0 / d_model)  # 10000 ** (i//2*2/d)
    angle = pos / denom                                             # (L, D)
    even_mask = (jnp.arange(d_model) % 2 == 0)[None, :]
    pe = jnp.where(even_mask, jnp.sin(angle), jnp.cos(angle))
    return pe.astype(jnp.float32)


def _pe_kernel(seed_ref, x_ref, pe_ref, o_ref, *,
               dropout_p: float, training: bool, total_cols: int):
    # x_ref: (TB, TF) block of flattened embeddings; pe_ref: (1, TF), broadcast over rows.
    y = x_ref[...] + pe_ref[...]

    if training and dropout_p > 0.0:
        if dropout_p >= 1.0:
            # nn.Dropout(p=1.0): everything dropped (avoids inf scale / NaNs).
            y = jnp.zeros_like(y)
        else:
            tb, tf = y.shape
            # Globally unique element id across the whole (B, F) tensor (wraps for huge
            # tensors, which is fine for a hash), mixed with the seed -> uniform bits.
            row = lax.broadcasted_iota(jnp.int32, (tb, tf), 0)
            col = lax.broadcasted_iota(jnp.int32, (tb, tf), 1)
            grow = pl.program_id(0) * tb + row
            gcol = pl.program_id(1) * tf + col
            ctr = grow * total_cols + gcol + seed_ref[0] * _GOLDEN
            bits = _mix32(_mix32(ctr))                       # ~uniform over all 32-bit patterns
            # keep with prob (1 - p): unsigned threshold compare done in the signed domain.
            thr = int(dropout_p * 4294967296.0) - 2147483648
            thr = max(-2147483648, min(2147483647, thr))
            keep = bits >= jnp.int32(thr)
            inv_keep = jnp.asarray(1.0 / (1.0 - dropout_p), y.dtype)
            y = jnp.where(keep, y * inv_keep, jnp.zeros_like(y))

    o_ref[...] = y                                           # single store per element


def positional_encoding(embeddings: jnp.ndarray,
                        pe: jnp.ndarray,
                        *,
                        dropout_p: float = 0.1,
                        training: bool = False,
                        seed: int = 0,
                        target_block_bytes: int = 4 * 1024 * 1024) -> jnp.ndarray:
    """embeddings: (B, L, D); pe: (L, D). Returns (B, L, D) = dropout(embeddings + pe)."""
    B, L, D = embeddings.shape
    assert pe.shape == (L, D)
    dtype = embeddings.dtype
    itemsize = jnp.dtype(dtype).itemsize

    # Lane-dense flatten; contiguous merge of the last two dims -> no data movement.
    F = L * D
    x2 = embeddings.reshape(B, F)
    pe2 = pe.astype(dtype).reshape(1, F)     # pre-cast once; no per-step convert in kernel.
    # NOTE: pe is added in the storage dtype (e.g. bf16), slightly lower precision than
    # torch's f32 add when embeddings are low precision.

    # --- block sizing -------------------------------------------------------------------
    sub = {4: 8, 2: 16, 1: 32}.get(itemsize, 8)   # native sublane tile for the dtype
    row_bytes = F * itemsize
    MIN_STEPS = 4                                 # desired pipeline depth over the batch axis

    if sub * row_bytes > target_block_bytes:
        # Even one sublane tile of rows exceeds the budget (very large L*D):
        # tile the feature axis with 128-lane-aligned chunks (keeps v7x VMEM in budget).
        TB = min(B, sub)
        lanes = (target_block_bytes // max(1, TB * itemsize)) // 128 * 128
        TF = min(F, max(128, lanes))
    else:
        TF = F                                    # full feature dim: exempt from 128 rule
        if B <= sub:
            TB = B                                # tiny batch: single full-dim block
        else:
            rows = max(sub, target_block_bytes // row_bytes)
            rows = min(rows, max(sub, B // MIN_STEPS))   # keep >= ~4 grid steps in flight
            TB = max(sub, (rows // sub) * sub)

    grid = (pl.cdiv(B, TB), pl.cdiv(F, TF))       # ragged last blocks are masked by Pallas

    # --- VMEM accounting: input + output double-buffered (4x block) + pe block -----------
    block_bytes = TB * TF * itemsize
    vmem_needed = 4 * block_bytes + 2 * TF * itemsize + (2 << 20)
    vmem_limit = None
    if vmem_needed > (16 << 20):                  # above v5e's default scoped-VMEM limit
        vmem_limit = int(min(max(vmem_needed + (4 << 20), 32 << 20), 60 << 20))

    kernel = functools.partial(_pe_kernel, dropout_p=float(dropout_p),
                               training=bool(training), total_cols=F)
    seed_arr = jnp.asarray([seed], dtype=jnp.int32)

    out = pl.pallas_call(
        kernel,
        out_shape=jax.ShapeDtypeStruct((B, F), dtype),
        grid_spec=pltpu.PrefetchScalarGridSpec(
            num_scalar_prefetch=1,
            grid=grid,
            in_specs=[
                pl.BlockSpec((TB, TF), lambda b, f, seed: (b, f)),   # embeddings tile
                pl.BlockSpec((1, TF), lambda b, f, seed: (0, f)),    # pe row (shared)
            ],
            out_specs=pl.BlockSpec((TB, TF), lambda b, f, seed: (b, f)),
        ),
        compiler_params=pltpu.CompilerParams(
            dimension_semantics=("parallel", "parallel"),
            vmem_limit_bytes=vmem_limit,
        ),
        cost_estimate=pl.CostEstimate(
            flops=B * F,
            transcendentals=0,
            bytes_accessed=(2 * B * F + F) * itemsize,
        ),
    )(seed_arr, x2, pe2)

    return out.reshape(B, L, D)


if __name__ == "__main__":
    # Small shapes consistent with the module: batch=2, word_pad_len=8, d_model=32.
    B, L, D = 2, 8, 32
    dropout = 0.1

    key = jax.random.PRNGKey(0)
    x = jax.random.normal(key, (B, L, D), dtype=jnp.float32)
    pe = _make_positional_encoding(d_model=D, word_pad_len=L)

    # Eval-mode forward (dropout is identity), matching the module's inference semantics.
    out = jax.block_until_ready(positional_encoding(x, pe, dropout_p=dropout, training=False))
    ref = x + pe[None, :, :]
    assert out.shape == (B, L, D)
    assert jnp.allclose(out, ref, atol=1e-6), "mismatch vs. reference x + pe"

    # Training-mode forward exercises the dropout path.
    # TODO(synk): the dropout mask comes from an in-kernel counter-based hash, not torch's
    # RNG, so it cannot bit-match PyTorch; we verify inverted-dropout semantics instead
    # (kept values scaled by 1/(1-p), dropped values exactly zero).
    out_tr = jax.block_until_ready(
        positional_encoding(x, pe, dropout_p=dropout, training=True, seed=123))
    scaled = ref * jnp.float32(1.0 / (1.0 - dropout))
    diff = jnp.where(out_tr == 0.0, 0.0, out_tr - scaled)
    assert jnp.allclose(diff, 0.0, atol=1e-5), "dropout kept values not scaled by 1/(1-p)"

    # dropout_p == 1.0 edge case: output must be all zeros (no inf/NaN).
    out_p1 = jax.block_until_ready(
        positional_encoding(x, pe, dropout_p=1.0, training=True, seed=7))
    assert jnp.allclose(out_p1, 0.0), "dropout_p=1.0 should zero the output"

    print("KERNEL_OK")
</pallas_src>

<mosaic_0001>
module attributes {stable_mosaic.version = 11 : i64} {
  func.func @_pe_kernel(%arg0: i32, %arg1: i32, %arg2: memref<1xi32, #tpu.memory_space<smem>>, %arg3: memref<2x256xf32, #tpu.memory_space<vmem>>, %arg4: memref<1x256xf32, #tpu.memory_space<vmem>>, %arg5: memref<2x256xf32, #tpu.memory_space<vmem>>) attributes {dimension_semantics = [#tpu.dimension_semantics<parallel>, #tpu.dimension_semantics<parallel>], iteration_bounds = array<i64: 1, 1>, scalar_prefetch = 1 : i64, scratch_operands = 0 : i64, tpu.core_type = #tpu.core_type<tc>, window_params = [{transform_indices = @transform_0, window_bounds = array<i64: 2, 256>}, {transform_indices = @transform_1, window_bounds = array<i64: 1, 256>}, {transform_indices = @transform_2, window_bounds = array<i64: 2, 256>}]} {
    %c0 = arith.constant 0 : index
    %c0_0 = arith.constant 0 : index
    %0 = vector.load %arg3[%c0, %c0_0] : memref<2x256xf32, #tpu.memory_space<vmem>>, vector<2x256xf32>
    %c0_1 = arith.constant 0 : index
    %c0_2 = arith.constant 0 : index
    %1 = vector.load %arg4[%c0_1, %c0_2] : memref<1x256xf32, #tpu.memory_space<vmem>>, vector<1x256xf32>
    %2 = vector.broadcast %1 : vector<1x256xf32> to vector<2x256xf32>
    %3 = arith.addf %0, %2 : vector<2x256xf32>
    %c0_3 = arith.constant 0 : index
    %c0_4 = arith.constant 0 : index
    %4 = vector.load %arg5[%c0_3, %c0_4] : memref<2x256xf32, #tpu.memory_space<vmem>>, vector<2x256xf32>
    tpu.vector_store %arg5[%c0_3, %c0_4], %3 {strides = array<i32>} : memref<2x256xf32, #tpu.memory_space<vmem>>, vector<2x256xf32>,
    return
  }
  func.func @transform_0(%arg0: i32, %arg1: i32, %arg2: memref<1xi32, #tpu.memory_space<smem>>) -> (i32, i32) {
    %c0_i32 = arith.constant 0 : i32
    return %arg0, %arg1 : i32, i32
  }
  func.func @transform_1(%arg0: i32, %arg1: i32, %arg2: memref<1xi32, #tpu.memory_space<smem>>) -> (i32, i32) {
    %c0_i32 = arith.constant 0 : i32
    %c0_i32_0 = arith.constant 0 : i32
    return %c0_i32, %arg1 : i32, i32
  }
  func.func @transform_2(%arg0: i32, %arg1: i32, %arg2: memref<1xi32, #tpu.memory_space<smem>>) -> (i32, i32) {
    %c0_i32 = arith.constant 0 : i32
    return %arg0, %arg1 : i32, i32
  }
}

</mosaic_0001>

<llo_original>
// kernel: tpu_custom_call.1
$region0: #{tpu_custom_call.1}
  #allocation0 [shape = 'u32[]', space=smem, size = 0x4, offset = 0x4, fixed_abs, tag = 'smem constant byte address 0x4 - core index']
  #allocation1 [shape = 'u32[72,128]{1,0:T(1,128)}', space=vmem, size = 0x9000, scoped, tag = 'internal scratch']
  #allocation2 [shape = 's32[1]{0}', space=sflag, size = 0x4, scoped, tag = 'scoped memory for tpu_custom_call.1']
  #allocation3 [shape = 's32[1]{0:T(128)S(6)}', space=smem, size = 0x200, scoped, tag = 'prefetched SMEM operand 0']
  %s0 = inlined_call_operand.<no memory space> [shape: s32[1], index: 0, kind: input, shape index: {}]
  %s1 = inlined_call_operand.hbm [shape: f32[2,256], index: 1, kind: input, shape index: {}]
  %s2 = inlined_call_operand.vmem [shape: f32[1,256], index: 2, kind: input, shape index: {}]
  %s3 = inlined_call_operand.hbm [shape: f32[2,256], index: 3, kind: output, shape index: {}]
  %s4 = sld [smem:[#allocation0]]
  $region22: #{tpu_custom_call.1} parent=0
    _
  %s6 = ssub.s32 1, %s4
  %s7 = scalar_select 0, %s6, %s4
  %8 = sst [smem:[#allocation3]] %s0
  $region1: #{tpu_custom_call.1} parent=0
    #allocation4 [shape = 'u8[2048]{0}', space=vmem, size = 0x800, scoped, tag = 'input window, operand 1, single buffered']
    #allocation5 [shape = 's32[1]{0}', space=sflag, size = 0x4, scoped, tag = 'scoped memory for tpu_custom_call.1']
    #allocation6 [shape = 's32[1]{0}', space=sflag, size = 0x4, scoped, tag = 'scoped memory for tpu_custom_call.1']
    #allocation7 [shape = 'u8[2048]{0}', space=vmem, size = 0x800, scoped, tag = 'output window, operand 0, single buffered']
    %9 = vsyncpa [#allocation5], 0
    %10 = vsyncpa [#allocation6], 0
    // Predicated region
    $region2: #{tpu_custom_call.1} parent=1 // pred_check
      _
    $region3: #{tpu_custom_call.1} parent=1 // pred_check_branch
      %12 = sbr.rel (0) target = $region5
    $region4: #{tpu_custom_call.1} parent=1 // pred_region
      %14 = vsyncadd [#allocation5], 0
      %s16 = sshll.u32 %s1, 4
      %s17 = int_to_ptr.hbm [resolvable:$true] %s16
      %s18 = sshll.u32 [#allocation4], 4
      %s19 = int_to_ptr.vmem [resolvable:$true] %s18
      %21 = dma.hbm_to_vmem [thread:$0]  %s17, 64, %s19, [#allocation5]
    $region5: #{tpu_custom_call.1} parent=1 // pred_fallthru
      _
    // Predicated region
    $region6: #{tpu_custom_call.1} parent=1 // pred_check
      _
    $region7: #{tpu_custom_call.1} parent=1 // pred_check_branch
      %23 = sbr.rel (0) target = $region9
    $region8: #{tpu_custom_call.1} parent=1 // pred_region
      _
    $region9: #{tpu_custom_call.1} parent=1 // pred_fallthru
      _
    // Predicated region
    $region10: #{tpu_custom_call.1} parent=1 // pred_check
      _
    $region11: #{tpu_custom_call.1} parent=1 // pred_check_branch
      %25 = sbr.rel (0) target = $region13
    $region12: #{tpu_custom_call.1} parent=1 // pred_region
      %27 = dma.done [#allocation5], 64
    $region13: #{tpu_custom_call.1} parent=1 // pred_fallthru
      _
    %v28 = vld [vmem:[#allocation4] sm:$0xf]
    %v29 = vld [vmem:[%s2] sm:$0x3]
    %v31 = vperm.slane %v29, 0
    %v32 = vperm.slane %v29, 1
    %v33 = vrot.slane %v32, 6
    %vm34 = vcmask 1041408
    %v35 = vsel %vm34, %v31, %v33
    %v37 = vadd.f32 %v28, %v35
    %38 = vst [vmem:[#allocation7] sm:$0xf] %v37
    // Predicated region
    $region14: #{tpu_custom_call.1} parent=1 // pred_check
      _
    $region15: #{tpu_custom_call.1} parent=1 // pred_check_branch
      %40 = sbr.rel (0) target = $region17
    $region16: #{tpu_custom_call.1} parent=1 // pred_region
      %42 = vsyncadd [#allocation6], 0
      %s44 = sshll.u32 [#allocation7], 4
      %s45 = int_to_ptr.vmem [resolvable:$true] %s44
      %s46 = sshll.u32 %s3, 4
      %s47 = int_to_ptr.hbm [resolvable:$true] %s46
      %49 = dma.vmem_to_hbm [thread:$0]  %s45, 64, %s47, [#allocation6]
    $region17: #{tpu_custom_call.1} parent=1 // pred_fallthru
      _
    // Predicated region
    $region18: #{tpu_custom_call.1} parent=1 // pred_check
      _
    $region19: #{tpu_custom_call.1} parent=1 // pred_check_branch
      %51 = sbr.rel (0) target = $region21
    $region20: #{tpu_custom_call.1} parent=1 // pred_region
      %53 = dma.done [#allocation6], 64
    $region21: #{tpu_custom_call.1} parent=1 // pred_fallthru
      _
    %54 = vsyncpa [#allocation5], 1
    %55 = vsyncpa [#allocation6], 1

</llo_original>
